<compile_context>
chip_gen: v6e
topology: v6e:2x2x1
jax: 0.10.0
libtpu: 0.0.40
codegen_flags: <defaults>
</compile_context>

<pallas_src>
import numpy as np
import jax
import jax.numpy as jnp
from jax.experimental import pallas as pl
from jax.experimental.pallas import tpu as pltpu


def _round_up(x, m):
    return (x + m - 1) // m * m


def _pick_tn(np_):
    for tn in (512, 256, 128):
        if np_ % tn == 0:
            return tn
    return np_


# Static architecture constants (reference module).
ENC_DIMS = ((512, 2051), (128, 512), (3, 128))   # trans_encoder block (out, in)
N_SUB = 2619
N_FULL = 10475


# -------------------- Pallas linear kernel (single K block, bf16 x bf16 -> f32) ----
def _linear_kernel(a_ref, w_ref, b_ref, o_ref):
    o_ref[...] = jnp.dot(a_ref[...], w_ref[...],
                         preferred_element_type=jnp.float32) + b_ref[...]


def pallas_linear(x, w_pad, b_pad, n_out, *, tm=None):
    """torch.nn.Linear: y = x @ W.T + b.
    x: (..., K) float.  w_pad: (Kp, Np) bf16 pre-transposed/pre-padded at init.
    b_pad: (1, Np) f32.  Returns (..., n_out) f32."""
    orig = x.shape
    K = orig[-1]
    Kp, Np = w_pad.shape
    M = int(np.prod(orig[:-1]))
    if tm is None:
        tm = min(_round_up(max(M, 1), 8), 128)
    Mp = _round_up(M, tm)
    tn = _pick_tn(Np)
    a = jnp.pad(x.reshape(M, K).astype(jnp.bfloat16), ((0, Mp - M), (0, Kp - K)))
    out = pl.pallas_call(
        _linear_kernel,
        out_shape=jax.ShapeDtypeStruct((Mp, Np), jnp.float32),
        grid_spec=pltpu.PrefetchScalarGridSpec(
            num_scalar_prefetch=0,
            grid=(Mp // tm, Np // tn),
            in_specs=[
                pl.BlockSpec((tm, Kp), lambda i, j: (i, 0)),
                pl.BlockSpec((Kp, tn), lambda i, j: (0, j)),
                pl.BlockSpec((1, tn), lambda i, j: (0, j)),
            ],
            out_specs=pl.BlockSpec((tm, tn), lambda i, j: (i, j)),
        ),
        compiler_params=pltpu.CompilerParams(
            dimension_semantics=("parallel", "parallel")),
    )(a, w_pad, b_pad)
    return out[:M, :n_out].reshape(orig[:-1] + (n_out,))


# -------------------- dual-branch linear (image + point encoder in one call) -------
def _dual_linear_kernel(a_ref, w_ref, b_ref, o_ref):
    o_ref[...] = jnp.dot(a_ref[...], w_ref[...],
                         preferred_element_type=jnp.float32) + b_ref[...]


def pallas_dual_linear(x2, w2, b2, n_out, *, tm=None):
    """Two independent Linear branches in one pallas_call.
    x2: (2, M, K).  w2: (2, Kp, Np) bf16.  b2: (2, 1, Np) f32. -> (2, M, n_out) f32."""
    _, M, K = x2.shape
    _, Kp, Np = w2.shape
    if tm is None:
        tm = min(_round_up(M, 8), 128)
    Mp = _round_up(M, tm)
    tn = _pick_tn(Np)
    a = jnp.pad(x2.astype(jnp.bfloat16), ((0, 0), (0, Mp - M), (0, Kp - K)))
    out = pl.pallas_call(
        _dual_linear_kernel,
        out_shape=jax.ShapeDtypeStruct((2, Mp, Np), jnp.float32),
        grid_spec=pltpu.PrefetchScalarGridSpec(
            num_scalar_prefetch=0,
            grid=(2, Mp // tm, Np // tn),
            in_specs=[
                pl.BlockSpec((None, tm, Kp), lambda s, i, j: (s, i, 0)),
                pl.BlockSpec((None, Kp, tn), lambda s, i, j: (s, 0, j)),
                pl.BlockSpec((None, 1, tn), lambda s, i, j: (s, 0, j)),
            ],
            out_specs=pl.BlockSpec((None, tm, tn), lambda s, i, j: (s, i, j)),
        ),
        compiler_params=pltpu.CompilerParams(
            dimension_semantics=("parallel", "parallel", "parallel")),
    )(a, w2, b2)
    return out[:, :M, :n_out]


# -------------------- fused end-fusion gate + res_output_dim head ------------------
def _endfusion_kernel(eimg_ref, ept_ref, fimg_ref, fpt_ref,
                      wa_ref, wb_ref, bias_ref, o_ref):
    eimg = eimg_ref[...]                                       # (tm, 8) f32
    ept = ept_ref[...]
    # reference gate: pick image branch when |image_score| <= |point_score|
    # (score = channel 2 of the 3-dim encoder output)
    mask = jnp.abs(eimg[:, 2:3]) <= jnp.abs(ept[:, 2:3])       # (tm, 1)
    fused3 = jnp.where(mask, eimg, ept).astype(jnp.bfloat16)   # (tm, 8)
    fusedK = jnp.where(mask, fimg_ref[...], fpt_ref[...])      # (tm, Kp) bf16
    acc = jnp.dot(fused3, wa_ref[...], preferred_element_type=jnp.float32)
    acc = acc + jnp.dot(fusedK, wb_ref[...], preferred_element_type=jnp.float32)
    o_ref[...] = acc + bias_ref[...]


def pallas_endfusion_head(enc_img, enc_pt, feat_img, feat_pt, wa, wb, bias, *, tm=128):
    """Gated end-fusion of cat(encoder_out[3], raw_features[2051]) followed by
    res_output_dim(2054 -> 3), fused in one kernel.  Returns (B, S, 3) f32."""
    B, S, D = feat_img.shape
    M = B * S
    Mp = _round_up(M, tm)
    Kp, Np = wb.shape

    def pad_enc(e):
        return jnp.pad(e.reshape(M, 3).astype(jnp.float32), ((0, Mp - M), (0, 5)))

    def pad_feat(f):
        return jnp.pad(f.reshape(M, D).astype(jnp.bfloat16), ((0, Mp - M), (0, Kp - D)))

    out = pl.pallas_call(
        _endfusion_kernel,
        out_shape=jax.ShapeDtypeStruct((Mp, Np), jnp.float32),
        grid_spec=pltpu.PrefetchScalarGridSpec(
            num_scalar_prefetch=0,
            grid=(Mp // tm,),
            in_specs=[
                pl.BlockSpec((tm, 8), lambda i: (i, 0)),
                pl.BlockSpec((tm, 8), lambda i: (i, 0)),
                pl.BlockSpec((tm, Kp), lambda i: (i, 0)),
                pl.BlockSpec((tm, Kp), lambda i: (i, 0)),
                pl.BlockSpec((8, Np), lambda i: (0, 0)),
                pl.BlockSpec((Kp, Np), lambda i: (0, 0)),
                pl.BlockSpec((1, Np), lambda i: (0, 0)),
            ],
            out_specs=pl.BlockSpec((tm, Np), lambda i: (i, 0)),
        ),
        compiler_params=pltpu.CompilerParams(dimension_semantics=("parallel",)),
    )(pad_enc(enc_img), pad_enc(enc_pt), pad_feat(feat_img), pad_feat(feat_pt),
      wa, wb, bias)
    return out[:M, :3].reshape(B, S, 3)


# -------------------- parameter construction (weights pre-padded ONCE) -------------
def _init_linear(key, out_f, in_f, scale=0.02):
    kw, kb = jax.random.split(key)
    w = jax.random.normal(kw, (out_f, in_f), jnp.float32) * scale
    b = jax.random.normal(kb, (out_f,), jnp.float32) * scale
    return w, b


def _prep(w, b, k_align=128, n_align=128):
    """Pre-transpose torch (N,K) weight to (K,N), zero-pad, cast to bf16."""
    N, K = w.shape
    Kp, Np = _round_up(K, k_align), _round_up(N, n_align)
    wt = jnp.pad(w.T, ((0, Kp - K), (0, Np - N))).astype(jnp.bfloat16)
    bb = jnp.pad(b.reshape(1, N), ((0, 0), (0, Np - N))).astype(jnp.float32)
    return wt, bb


def make_params(key, img_hw=(14, 14)):
    keys = jax.random.split(key, 24)
    H, W = img_hw
    ph, pw = H // 7, W // 7
    p = {}

    # ---- module's own layers ----
    p['grid_feat_dim'] = _prep(*_init_linear(keys[0], 2051, 1024))
    p['point_embedding'] = _prep(*_init_linear(keys[1], 2051, 3))
    # point_feat_num_dim: Linear(49, 1) over the cluster-token axis; kept raw
    # (tiny weighted reduction, evaluated with an XLA einsum to avoid a transpose).
    p['point_feat_num_dim'] = _init_linear(keys[2], 1, 49)

    # res_output_dim: Linear(2054, 3) split for the fused end-fusion head:
    # rows acting on the 3 encoder-output channels vs. the 2051 raw-feature channels.
    w_res, b_res = _init_linear(keys[3], 3, 2054)
    p['res_wa'], _ = _prep(w_res[:, :3], jnp.zeros((3,), jnp.float32), k_align=8)
    p['res_wb'], p['res_bias'] = _prep(w_res[:, 3:], b_res)

    # upsampling / upsampling2 folded: one (655 -> 2619+10475) affine map.
    w1, b1 = _init_linear(keys[4], N_SUB, 655)
    w2, b2 = _init_linear(keys[5], N_FULL, N_SUB)
    w_full = w2 @ w1                                    # (10475, 655)
    b_full = w2 @ b1 + b2
    w_both = jnp.concatenate([w1, w_full], axis=0)      # (13094, 655)
    b_both = jnp.concatenate([b1, b_full], axis=0)
    p['upsampling_both'] = _prep(w_both, b_both, n_align=512)

    # TODO(synk): trans_encoder (3 Graphormer/BERT blocks 2051->512->128->3) is an
    # external module; synthesized as per-block linear projections.  The image and
    # point encoders (point = deepcopy(trans_encoder)) are stacked so each layer
    # runs both branches in a single pallas_call.
    p['enc_w'], p['enc_b'] = [], []
    for i, (o, c) in enumerate(ENC_DIMS):
        w, b = _init_linear(keys[6 + i], o, c)
        wt, bb = _prep(w, b)
        p['enc_w'].append(jnp.stack([wt, wt], axis=0))   # deepcopy => same init weights
        p['enc_b'].append(jnp.stack([bb, bb], axis=0))

    # TODO(synk): HRNet backbone synthesized as flatten->Linear (2048 global feat)
    # and (ph x pw)-patchify->Linear (49-token grid feature map, 1024 channels).
    p['bb_img'] = _prep(*_init_linear(keys[10], 2048, 3 * H * W))
    p['bb_grid'] = _prep(*_init_linear(keys[11], 1024, 3 * ph * pw))
    # TODO(synk): PointnetSAModule synthesized as a per-point Linear(6 -> 2048) on
    # the first 49 points (npoint=49 clusters).
    p['pointnet'] = _prep(*_init_linear(keys[12], 2048, 6))
    # TODO(synk): SMPL + mesh_sampler templates synthesized as fixed random geometry.
    p['template_joints'] = jax.random.normal(keys[13], (1, 22, 3), jnp.float32) * 0.1
    p['template_verts_sub2'] = jax.random.normal(keys[14], (1, 655, 3), jnp.float32) * 0.1
    return p


# -------------------- forward pass (is_train=False path) ---------------------------
def end_fusion_graphormer_forward(params, images, pcls):
    B = images.shape[0]
    num_joints = params['template_joints'].shape[1]               # 22

    # ---- template geometry / ref_vertices ----
    tj = params['template_joints']
    tv = params['template_verts_sub2']
    pelvis = tj[:, 0:1, :]
    tj = tj - pelvis
    tv = tv - pelvis
    ref_vertices = jnp.concatenate([tj, tv], axis=1)              # (1, 677, 3)
    ref_vertices = jnp.broadcast_to(ref_vertices, (B,) + ref_vertices.shape[1:])

    # ---- backbone stand-in ----
    H, W = images.shape[2], images.shape[3]
    ph, pw = H // 7, W // 7
    image_feat = pallas_linear(images.reshape(B, -1), *params['bb_img'], 2048)   # (B,2048)
    patches = images.reshape(B, 3, 7, ph, 7, pw)
    patches = patches.transpose(0, 2, 4, 1, 3, 5).reshape(B, 49, 3 * ph * pw)
    grid_feat = pallas_linear(patches, *params['bb_grid'], 1024)                 # (B,49,1024)
    # backbone grid output consumed directly as (B,49,1024) tokens; the reference's
    # NCHW flatten/transpose round trip is a no-op layout change here.
    grid_feat = pallas_linear(grid_feat, *params['grid_feat_dim'], 2051)         # (B,49,2051)

    # ---- pointnet2 stand-in ----
    xyz = pcls[:, :49, :3]                                                       # (B,49,3)
    cluster_feat = pallas_linear(pcls[:, :49, :], *params['pointnet'], 2048)     # (B,49,2048)
    xyz_embedding = pallas_linear(xyz, *params['point_embedding'], 2051)         # (B,49,2051)
    # point_feat_num_dim: Linear(49 -> 1) over the token axis == weighted reduction
    # (tiny; done at XLA level to avoid the channel-major transpose).
    w_pfn, b_pfn = params['point_feat_num_dim']
    global_point_feat = jnp.einsum('btc,t->bc', cluster_feat, w_pfn[0]) + b_pfn[0]  # (B,2048)
    cluster_feat = jnp.concatenate([xyz, cluster_feat], axis=2)                  # (B,49,2051)
    cluster_feat = xyz_embedding + cluster_feat

    # ---- token assembly ----
    S = ref_vertices.shape[1]                                                    # 677
    image_tok = jnp.broadcast_to(image_feat[:, None, :], (B, S, 2048))
    point_tok = jnp.broadcast_to(global_point_feat[:, None, :], (B, S, 2048))
    image_features = jnp.concatenate([ref_vertices, image_tok], axis=2)          # (B,677,2051)
    point_features = jnp.concatenate([ref_vertices, point_tok], axis=2)
    image_features = jnp.concatenate([image_features, grid_feat], axis=1)        # (B,726,2051)
    point_features = jnp.concatenate([point_features, cluster_feat], axis=1)
    image_features = image_features.astype(jnp.bfloat16)
    point_features = point_features.astype(jnp.bfloat16)

    # ---- image / point transformer encoders (both branches per pallas_call) ----
    Sa = image_features.shape[1]                                                 # 726
    M = B * Sa
    x2 = jnp.stack([image_features, point_features], axis=0).reshape(2, M, 2051)
    for i, (o, _) in enumerate(ENC_DIMS):
        x2 = pallas_dual_linear(x2, params['enc_w'][i], params['enc_b'][i], o)
    _image_enc = x2[0].reshape(B, Sa, 3)                                         # (B,726,3)
    _point_enc = x2[1].reshape(B, Sa, 3)

    image_feat_score = _image_enc[:, :, 2:3]
    point_feat_score = _point_enc[:, :, 2:3]

    # ---- fused end-fusion gate + res_output_dim head ----
    features = pallas_endfusion_head(_image_enc, _point_enc,
                                     image_features, point_features,
                                     params['res_wa'], params['res_wb'],
                                     params['res_bias'])                          # (B,726,3)

    pred_3d_joints = features[:, :num_joints, :]
    pred_vertices_sub2 = features[:, num_joints:677, :]                           # (B,655,3)
    pred_score = jnp.concatenate([image_feat_score, point_feat_score],
                                 axis=1).squeeze(axis=-1)                         # (B,1452)

    pred_dict = {
        'pred_score': pred_score,
        'pred_image_joints': _image_enc[:, :22, :3],
        'pred_image_verts': _image_enc[:, 22:677, :3],
        'pred_point_joints': _point_enc[:, :22, :3],
        'pred_point_verts': _point_enc[:, 22:677, :3],
    }

    # ---- mesh upsampling: both levels from one folded matmul ----
    temp_transpose = pred_vertices_sub2.transpose(0, 2, 1)                        # (B,3,655)
    ups = pallas_linear(temp_transpose, *params['upsampling_both'],
                        N_SUB + N_FULL)                                           # (B,3,13094)
    pred_vertices_sub = ups[:, :, :N_SUB].transpose(0, 2, 1)                      # (B,2619,3)
    pred_vertices_full = ups[:, :, N_SUB:].transpose(0, 2, 1)                     # (B,10475,3)

    return (pred_dict, pred_3d_joints, pred_vertices_sub2,
            pred_vertices_sub, pred_vertices_full)


if __name__ == "__main__":
    key = jax.random.PRNGKey(0)
    kp, ki, kc = jax.random.split(key, 3)

    B = 2
    images = jax.random.normal(ki, (B, 3, 14, 14), jnp.float32)   # NCHW
    pcls = jax.random.normal(kc, (B, 64, 6), jnp.float32)

    params = make_params(kp, img_hw=(14, 14))

    fwd = jax.jit(end_fusion_graphormer_forward)
    outs = fwd(params, images, pcls)
    outs = jax.block_until_ready(outs)

    pred_dict, pred_3d_joints, pred_v_sub2, pred_v_sub, pred_v_full = outs
    assert pred_dict['pred_score'].shape == (B, 2 * 726)
    assert pred_3d_joints.shape == (B, 22, 3)
    assert pred_v_sub2.shape == (B, 655, 3)
    assert pred_v_sub.shape == (B, 2619, 3)
    assert pred_v_full.shape == (B, 10475, 3)
    assert pred_dict['pred_image_verts'].shape == (B, 655, 3)
    assert pred_dict['pred_point_joints'].shape == (B, 22, 3)
    assert bool(jnp.isfinite(pred_v_full).all())
    print("KERNEL_OK")
</pallas_src>

<mosaic_0001>
module attributes {stable_mosaic.version = 11 : i64} {
  func.func @_linear_kernel(%arg0: i32, %arg1: i32, %arg2: memref<8x640xbf16, #tpu.memory_space<vmem>>, %arg3: memref<640x512xbf16, #tpu.memory_space<vmem>>, %arg4: memref<1x512xf32, #tpu.memory_space<vmem>>, %arg5: memref<8x512xf32, #tpu.memory_space<vmem>>) attributes {dimension_semantics = [#tpu.dimension_semantics<parallel>, #tpu.dimension_semantics<parallel>], iteration_bounds = array<i64: 1, 4>, scalar_prefetch = 0 : i64, scratch_operands = 0 : i64, tpu.core_type = #tpu.core_type<tc>, window_params = [{transform_indices = @transform_0, window_bounds = array<i64: 8, 640>}, {transform_indices = @transform_1, window_bounds = array<i64: 640, 512>}, {transform_indices = @transform_2, window_bounds = array<i64: 1, 512>}, {transform_indices = @transform_3, window_bounds = array<i64: 8, 512>}]} {
    %c0 = arith.constant 0 : index
    %c0_0 = arith.constant 0 : index
    %0 = vector.load %arg2[%c0, %c0_0] : memref<8x640xbf16, #tpu.memory_space<vmem>>, vector<8x640xbf16>
    %c0_1 = arith.constant 0 : index
    %c0_2 = arith.constant 0 : index
    %1 = vector.load %arg3[%c0_1, %c0_2] : memref<640x512xbf16, #tpu.memory_space<vmem>>, vector<640x512xbf16>
    %cst = arith.constant dense<0.000000e+00> : vector<8x512xf32>
    %2 = tpu.matmul %0, %1, %cst {dimension_numbers = #tpu.dot_dimension_numbers<[1], [0], [0], [1], [0, 0, 1, 1], [], []>} : vector<8x640xbf16>, vector<640x512xbf16>, vector<8x512xf32> -> vector<8x512xf32>
    %c0_3 = arith.constant 0 : index
    %c0_4 = arith.constant 0 : index
    %3 = vector.load %arg4[%c0_3, %c0_4] : memref<1x512xf32, #tpu.memory_space<vmem>>, vector<1x512xf32>
    %4 = vector.broadcast %3 : vector<1x512xf32> to vector<8x512xf32>
    %5 = arith.addf %2, %4 : vector<8x512xf32>
    %c0_5 = arith.constant 0 : index
    %c0_6 = arith.constant 0 : index
    %6 = vector.load %arg5[%c0_5, %c0_6] : memref<8x512xf32, #tpu.memory_space<vmem>>, vector<8x512xf32>
    tpu.vector_store %arg5[%c0_5, %c0_6], %5 {strides = array<i32>} : memref<8x512xf32, #tpu.memory_space<vmem>>, vector<8x512xf32>,
    return
  }
  func.func @transform_0(%arg0: i32, %arg1: i32) -> (i32, i32) {
    %c0_i32 = arith.constant 0 : i32
    %c0_i32_0 = arith.constant 0 : i32
    return %arg0, %c0_i32 : i32, i32
  }
  func.func @transform_1(%arg0: i32, %arg1: i32) -> (i32, i32) {
    %c0_i32 = arith.constant 0 : i32
    %c0_i32_0 = arith.constant 0 : i32
    return %c0_i32, %arg1 : i32, i32
  }
  func.func @transform_2(%arg0: i32, %arg1: i32) -> (i32, i32) {
    %c0_i32 = arith.constant 0 : i32
    %c0_i32_0 = arith.constant 0 : i32
    return %c0_i32, %arg1 : i32, i32
  }
  func.func @transform_3(%arg0: i32, %arg1: i32) -> (i32, i32) {
    %c0_i32 = arith.constant 0 : i32
    return %arg0, %arg1 : i32, i32
  }
}

module attributes {stable_mosaic.version = 11 : i64} {
  func.func @_linear_kernel(%arg0: i32, %arg1: i32, %arg2: memref<104x128xbf16, #tpu.memory_space<vmem>>, %arg3: memref<128x512xbf16, #tpu.memory_space<vmem>>, %arg4: memref<1x512xf32, #tpu.memory_space<vmem>>, %arg5: memref<104x512xf32, #tpu.memory_space<vmem>>) attributes {dimension_semantics = [#tpu.dimension_semantics<parallel>, #tpu.dimension_semantics<parallel>], iteration_bounds = array<i64: 1, 2>, scalar_prefetch = 0 : i64, scratch_operands = 0 : i64, tpu.core_type = #tpu.core_type<tc>, window_params = [{transform_indices = @transform_0, window_bounds = array<i64: 104, 128>}, {transform_indices = @transform_1, window_bounds = array<i64: 128, 512>}, {transform_indices = @transform_2, window_bounds = array<i64: 1, 512>}, {transform_indices = @transform_3, window_bounds = array<i64: 104, 512>}]} {
    %c0 = arith.constant 0 : index
    %c0_0 = arith.constant 0 : index
    %0 = vector.load %arg2[%c0, %c0_0] : memref<104x128xbf16, #tpu.memory_space<vmem>>, vector<104x128xbf16>
    %c0_1 = arith.constant 0 : index
    %c0_2 = arith.constant 0 : index
    %1 = vector.load %arg3[%c0_1, %c0_2] : memref<128x512xbf16, #tpu.memory_space<vmem>>, vector<128x512xbf16>
    %cst = arith.constant dense<0.000000e+00> : vector<104x512xf32>
    %2 = tpu.matmul %0, %1, %cst {dimension_numbers = #tpu.dot_dimension_numbers<[1], [0], [0], [1], [0, 0, 1, 1], [], []>} : vector<104x128xbf16>, vector<128x512xbf16>, vector<104x512xf32> -> vector<104x512xf32>
    %c0_3 = arith.constant 0 : index
    %c0_4 = arith.constant 0 : index
    %3 = vector.load %arg4[%c0_3, %c0_4] : memref<1x512xf32, #tpu.memory_space<vmem>>, vector<1x512xf32>
    %4 = vector.broadcast %3 : vector<1x512xf32> to vector<104x512xf32>
    %5 = arith.addf %2, %4 : vector<104x512xf32>
    %c0_5 = arith.constant 0 : index
    %c0_6 = arith.constant 0 : index
    %6 = vector.load %arg5[%c0_5, %c0_6] : memref<104x512xf32, #tpu.memory_space<vmem>>, vector<104x512xf32>
    tpu.vector_store %arg5[%c0_5, %c0_6], %5 {strides = array<i32>} : memref<104x512xf32, #tpu.memory_space<vmem>>, vector<104x512xf32>,
    return
  }
  func.func @transform_0(%arg0: i32, %arg1: i32) -> (i32, i32) {
    %c0_i32 = arith.constant 0 : i32
    %c0_i32_0 = arith.constant 0 : i32
    return %arg0, %c0_i32 : i32, i32
  }
  func.func @transform_1(%arg0: i32, %arg1: i32) -> (i32, i32) {
    %c0_i32 = arith.constant 0 : i32
    %c0_i32_0 = arith.constant 0 : i32
    return %c0_i32, %arg1 : i32, i32
  }
  func.func @transform_2(%arg0: i32, %arg1: i32) -> (i32, i32) {
    %c0_i32 = arith.constant 0 : i32
    %c0_i32_0 = arith.constant 0 : i32
    return %c0_i32, %arg1 : i32, i32
  }
  func.func @transform_3(%arg0: i32, %arg1: i32) -> (i32, i32) {
    %c0_i32 = arith.constant 0 : i32
    return %arg0, %arg1 : i32, i32
  }
}

module attributes {stable_mosaic.version = 11 : i64} {
  func.func @_linear_kernel(%arg0: i32, %arg1: i32, %arg2: memref<104x1024xbf16, #tpu.memory_space<vmem>>, %arg3: memref<1024x128xbf16, #tpu.memory_space<vmem>>, %arg4: memref<1x128xf32, #tpu.memory_space<vmem>>, %arg5: memref<104x128xf32, #tpu.memory_space<vmem>>) attributes {dimension_semantics = [#tpu.dimension_semantics<parallel>, #tpu.dimension_semantics<parallel>], iteration_bounds = array<i64: 1, 17>, scalar_prefetch = 0 : i64, scratch_operands = 0 : i64, tpu.core_type = #tpu.core_type<tc>, window_params = [{transform_indices = @transform_0, window_bounds = array<i64: 104, 1024>}, {transform_indices = @transform_1, window_bounds = array<i64: 1024, 128>}, {transform_indices = @transform_2, window_bounds = array<i64: 1, 128>}, {transform_indices = @transform_3, window_bounds = array<i64: 104, 128>}]} {
    %c0 = arith.constant 0 : index
    %c0_0 = arith.constant 0 : index
    %0 = vector.load %arg2[%c0, %c0_0] : memref<104x1024xbf16, #tpu.memory_space<vmem>>, vector<104x1024xbf16>
    %c0_1 = arith.constant 0 : index
    %c0_2 = arith.constant 0 : index
    %1 = vector.load %arg3[%c0_1, %c0_2] : memref<1024x128xbf16, #tpu.memory_space<vmem>>, vector<1024x128xbf16>
    %cst = arith.constant dense<0.000000e+00> : vector<104x128xf32>
    %2 = tpu.matmul %0, %1, %cst {dimension_numbers = #tpu.dot_dimension_numbers<[1], [0], [0], [1], [0, 0, 1, 1], [], []>} : vector<104x1024xbf16>, vector<1024x128xbf16>, vector<104x128xf32> -> vector<104x128xf32>
    %c0_3 = arith.constant 0 : index
    %c0_4 = arith.constant 0 : index
    %3 = vector.load %arg4[%c0_3, %c0_4] : memref<1x128xf32, #tpu.memory_space<vmem>>, vector<1x128xf32>
    %4 = vector.broadcast %3 : vector<1x128xf32> to vector<104x128xf32>
    %5 = arith.addf %2, %4 : vector<104x128xf32>
    %c0_5 = arith.constant 0 : index
    %c0_6 = arith.constant 0 : index
    %6 = vector.load %arg5[%c0_5, %c0_6] : memref<104x128xf32, #tpu.memory_space<vmem>>, vector<104x128xf32>
    tpu.vector_store %arg5[%c0_5, %c0_6], %5 {strides = array<i32>} : memref<104x128xf32, #tpu.memory_space<vmem>>, vector<104x128xf32>,
    return
  }
  func.func @transform_0(%arg0: i32, %arg1: i32) -> (i32, i32) {
    %c0_i32 = arith.constant 0 : i32
    %c0_i32_0 = arith.constant 0 : i32
    return %arg0, %c0_i32 : i32, i32
  }
  func.func @transform_1(%arg0: i32, %arg1: i32) -> (i32, i32) {
    %c0_i32 = arith.constant 0 : i32
    %c0_i32_0 = arith.constant 0 : i32
    return %c0_i32, %arg1 : i32, i32
  }
  func.func @transform_2(%arg0: i32, %arg1: i32) -> (i32, i32) {
    %c0_i32 = arith.constant 0 : i32
    %c0_i32_0 = arith.constant 0 : i32
    return %c0_i32, %arg1 : i32, i32
  }
  func.func @transform_3(%arg0: i32, %arg1: i32) -> (i32, i32) {
    %c0_i32 = arith.constant 0 : i32
    return %arg0, %arg1 : i32, i32
  }
}

module attributes {stable_mosaic.version = 11 : i64} {
  func.func @_linear_kernel(%arg0: i32, %arg1: i32, %arg2: memref<104x128xbf16, #tpu.memory_space<vmem>>, %arg3: memref<128x512xbf16, #tpu.memory_space<vmem>>, %arg4: memref<1x512xf32, #tpu.memory_space<vmem>>, %arg5: memref<104x512xf32, #tpu.memory_space<vmem>>) attributes {dimension_semantics = [#tpu.dimension_semantics<parallel>, #tpu.dimension_semantics<parallel>], iteration_bounds = array<i64: 1, 4>, scalar_prefetch = 0 : i64, scratch_operands = 0 : i64, tpu.core_type = #tpu.core_type<tc>, window_params = [{transform_indices = @transform_0, window_bounds = array<i64: 104, 128>}, {transform_indices = @transform_1, window_bounds = array<i64: 128, 512>}, {transform_indices = @transform_2, window_bounds = array<i64: 1, 512>}, {transform_indices = @transform_3, window_bounds = array<i64: 104, 512>}]} {
    %c0 = arith.constant 0 : index
    %c0_0 = arith.constant 0 : index
    %0 = vector.load %arg2[%c0, %c0_0] : memref<104x128xbf16, #tpu.memory_space<vmem>>, vector<104x128xbf16>
    %c0_1 = arith.constant 0 : index
    %c0_2 = arith.constant 0 : index
    %1 = vector.load %arg3[%c0_1, %c0_2] : memref<128x512xbf16, #tpu.memory_space<vmem>>, vector<128x512xbf16>
    %cst = arith.constant dense<0.000000e+00> : vector<104x512xf32>
    %2 = tpu.matmul %0, %1, %cst {dimension_numbers = #tpu.dot_dimension_numbers<[1], [0], [0], [1], [0, 0, 1, 1], [], []>} : vector<104x128xbf16>, vector<128x512xbf16>, vector<104x512xf32> -> vector<104x512xf32>
    %c0_3 = arith.constant 0 : index
    %c0_4 = arith.constant 0 : index
    %3 = vector.load %arg4[%c0_3, %c0_4] : memref<1x512xf32, #tpu.memory_space<vmem>>, vector<1x512xf32>
    %4 = vector.broadcast %3 : vector<1x512xf32> to vector<104x512xf32>
    %5 = arith.addf %2, %4 : vector<104x512xf32>
    %c0_5 = arith.constant 0 : index
    %c0_6 = arith.constant 0 : index
    %6 = vector.load %arg5[%c0_5, %c0_6] : memref<104x512xf32, #tpu.memory_space<vmem>>, vector<104x512xf32>
    tpu.vector_store %arg5[%c0_5, %c0_6], %5 {strides = array<i32>} : memref<104x512xf32, #tpu.memory_space<vmem>>, vector<104x512xf32>,
    return
  }
  func.func @transform_0(%arg0: i32, %arg1: i32) -> (i32, i32) {
    %c0_i32 = arith.constant 0 : i32
    %c0_i32_0 = arith.constant 0 : i32
    return %arg0, %c0_i32 : i32, i32
  }
  func.func @transform_1(%arg0: i32, %arg1: i32) -> (i32, i32) {
    %c0_i32 = arith.constant 0 : i32
    %c0_i32_0 = arith.constant 0 : i32
    return %c0_i32, %arg1 : i32, i32
  }
  func.func @transform_2(%arg0: i32, %arg1: i32) -> (i32, i32) {
    %c0_i32 = arith.constant 0 : i32
    %c0_i32_0 = arith.constant 0 : i32
    return %c0_i32, %arg1 : i32, i32
  }
  func.func @transform_3(%arg0: i32, %arg1: i32) -> (i32, i32) {
    %c0_i32 = arith.constant 0 : i32
    return %arg0, %arg1 : i32, i32
  }
}

module attributes {stable_mosaic.version = 11 : i64} {
  func.func @_linear_kernel(%arg0: i32, %arg1: i32, %arg2: memref<104x128xbf16, #tpu.memory_space<vmem>>, %arg3: memref<128x128xbf16, #tpu.memory_space<vmem>>, %arg4: memref<1x128xf32, #tpu.memory_space<vmem>>, %arg5: memref<104x128xf32, #tpu.memory_space<vmem>>) attributes {dimension_semantics = [#tpu.dimension_semantics<parallel>, #tpu.dimension_semantics<parallel>], iteration_bounds = array<i64: 1, 17>, scalar_prefetch = 0 : i64, scratch_operands = 0 : i64, tpu.core_type = #tpu.core_type<tc>, window_params = [{transform_indices = @transform_0, window_bounds = array<i64: 104, 128>}, {transform_indices = @transform_1, window_bounds = array<i64: 128, 128>}, {transform_indices = @transform_2, window_bounds = array<i64: 1, 128>}, {transform_indices = @transform_3, window_bounds = array<i64: 104, 128>}]} {
    %c0 = arith.constant 0 : index
    %c0_0 = arith.constant 0 : index
    %0 = vector.load %arg2[%c0, %c0_0] : memref<104x128xbf16, #tpu.memory_space<vmem>>, vector<104x128xbf16>
    %c0_1 = arith.constant 0 : index
    %c0_2 = arith.constant 0 : index
    %1 = vector.load %arg3[%c0_1, %c0_2] : memref<128x128xbf16, #tpu.memory_space<vmem>>, vector<128x128xbf16>
    %cst = arith.constant dense<0.000000e+00> : vector<104x128xf32>
    %2 = tpu.matmul %0, %1, %cst {dimension_numbers = #tpu.dot_dimension_numbers<[1], [0], [0], [1], [0, 0, 1, 1], [], []>} : vector<104x128xbf16>, vector<128x128xbf16>, vector<104x128xf32> -> vector<104x128xf32>
    %c0_3 = arith.constant 0 : index
    %c0_4 = arith.constant 0 : index
    %3 = vector.load %arg4[%c0_3, %c0_4] : memref<1x128xf32, #tpu.memory_space<vmem>>, vector<1x128xf32>
    %4 = vector.broadcast %3 : vector<1x128xf32> to vector<104x128xf32>
    %5 = arith.addf %2, %4 : vector<104x128xf32>
    %c0_5 = arith.constant 0 : index
    %c0_6 = arith.constant 0 : index
    %6 = vector.load %arg5[%c0_5, %c0_6] : memref<104x128xf32, #tpu.memory_space<vmem>>, vector<104x128xf32>
    tpu.vector_store %arg5[%c0_5, %c0_6], %5 {strides = array<i32>} : memref<104x128xf32, #tpu.memory_space<vmem>>, vector<104x128xf32>,
    return
  }
  func.func @transform_0(%arg0: i32, %arg1: i32) -> (i32, i32) {
    %c0_i32 = arith.constant 0 : i32
    %c0_i32_0 = arith.constant 0 : i32
    return %arg0, %c0_i32 : i32, i32
  }
  func.func @transform_1(%arg0: i32, %arg1: i32) -> (i32, i32) {
    %c0_i32 = arith.constant 0 : i32
    %c0_i32_0 = arith.constant 0 : i32
    return %c0_i32, %arg1 : i32, i32
  }
  func.func @transform_2(%arg0: i32, %arg1: i32) -> (i32, i32) {
    %c0_i32 = arith.constant 0 : i32
    %c0_i32_0 = arith.constant 0 : i32
    return %c0_i32, %arg1 : i32, i32
  }
  func.func @transform_3(%arg0: i32, %arg1: i32) -> (i32, i32) {
    %c0_i32 = arith.constant 0 : i32
    return %arg0, %arg1 : i32, i32
  }
}

module attributes {stable_mosaic.version = 11 : i64} {
  func.func @_dual_linear_kernel(%arg0: i32, %arg1: i32, %arg2: i32, %arg3: memref<1x128x2176xbf16, #tpu.memory_space<vmem>>, %arg4: memref<1x2176x512xbf16, #tpu.memory_space<vmem>>, %arg5: memref<1x1x512xf32, #tpu.memory_space<vmem>>, %arg6: memref<1x128x512xf32, #tpu.memory_space<vmem>>) attributes {dimension_semantics = [#tpu.dimension_semantics<parallel>, #tpu.dimension_semantics<parallel>, #tpu.dimension_semantics<parallel>], iteration_bounds = array<i64: 2, 12, 1>, scalar_prefetch = 0 : i64, scratch_operands = 0 : i64, tpu.core_type = #tpu.core_type<tc>, window_params = [{transform_indices = @transform_0, window_bounds = array<i64: 1, 128, 2176>}, {transform_indices = @transform_1, window_bounds = array<i64: 1, 2176, 512>}, {transform_indices = @transform_2, window_bounds = array<i64: 1, 1, 512>}, {transform_indices = @transform_3, window_bounds = array<i64: 1, 128, 512>}]} {
    %c0 = arith.constant 0 : index
    %c0_0 = arith.constant 0 : index
    %c0_1 = arith.constant 0 : index
    %0 = vector.load %arg3[%c0, %c0_0, %c0_1] : memref<1x128x2176xbf16, #tpu.memory_space<vmem>>, vector<1x128x2176xbf16>
    %1 = vector.shape_cast %0 : vector<1x128x2176xbf16> to vector<128x2176xbf16>
    %c0_2 = arith.constant 0 : index
    %c0_3 = arith.constant 0 : index
    %c0_4 = arith.constant 0 : index
    %2 = vector.load %arg4[%c0_2, %c0_3, %c0_4] : memref<1x2176x512xbf16, #tpu.memory_space<vmem>>, vector<1x2176x512xbf16>
    %3 = vector.shape_cast %2 : vector<1x2176x512xbf16> to vector<2176x512xbf16>
    %cst = arith.constant dense<0.000000e+00> : vector<128x512xf32>
    %4 = tpu.matmul %1, %3, %cst {dimension_numbers = #tpu.dot_dimension_numbers<[1], [0], [0], [1], [0, 0, 1, 1], [], []>} : vector<128x2176xbf16>, vector<2176x512xbf16>, vector<128x512xf32> -> vector<128x512xf32>
    %c0_5 = arith.constant 0 : index
    %c0_6 = arith.constant 0 : index
    %c0_7 = arith.constant 0 : index
    %5 = vector.load %arg5[%c0_5, %c0_6, %c0_7] : memref<1x1x512xf32, #tpu.memory_space<vmem>>, vector<1x1x512xf32>
    %6 = vector.shape_cast %5 : vector<1x1x512xf32> to vector<1x512xf32>
    %7 = vector.broadcast %6 : vector<1x512xf32> to vector<128x512xf32>
    %8 = arith.addf %4, %7 : vector<128x512xf32>
    %c0_8 = arith.constant 0 : index
    %c0_9 = arith.constant 0 : index
    %c0_10 = arith.constant 0 : index
    %9 = vector.load %arg6[%c0_8, %c0_9, %c0_10] : memref<1x128x512xf32, #tpu.memory_space<vmem>>, vector<1x128x512xf32>
    %10 = vector.shape_cast %9 : vector<1x128x512xf32> to vector<128x512xf32>
    %11 = vector.shape_cast %8 : vector<128x512xf32> to vector<1x128x512xf32>
    tpu.vector_store %arg6[%c0_8, %c0_9, %c0_10], %11 {strides = array<i32>} : memref<1x128x512xf32, #tpu.memory_space<vmem>>, vector<1x128x512xf32>,
    return
  }
  func.func @transform_0(%arg0: i32, %arg1: i32, %arg2: i32) -> (i32, i32, i32) {
    %c0_i32 = arith.constant 0 : i32
    %c0_i32_0 = arith.constant 0 : i32
    return %arg0, %arg1, %c0_i32 : i32, i32, i32
  }
  func.func @transform_1(%arg0: i32, %arg1: i32, %arg2: i32) -> (i32, i32, i32) {
    %c0_i32 = arith.constant 0 : i32
    %c0_i32_0 = arith.constant 0 : i32
    return %arg0, %c0_i32, %arg2 : i32, i32, i32
  }
  func.func @transform_2(%arg0: i32, %arg1: i32, %arg2: i32) -> (i32, i32, i32) {
    %c0_i32 = arith.constant 0 : i32
    %c0_i32_0 = arith.constant 0 : i32
    return %arg0, %c0_i32, %arg2 : i32, i32, i32
  }
  func.func @transform_3(%arg0: i32, %arg1: i32, %arg2: i32) -> (i32, i32, i32) {
    %c0_i32 = arith.constant 0 : i32
    return %arg0, %arg1, %arg2 : i32, i32, i32
  }
}

module attributes {stable_mosaic.version = 11 : i64} {
  func.func @_dual_linear_kernel(%arg0: i32, %arg1: i32, %arg2: i32, %arg3: memref<1x128x512xbf16, #tpu.memory_space<vmem>>, %arg4: memref<1x512x128xbf16, #tpu.memory_space<vmem>>, %arg5: memref<1x1x128xf32, #tpu.memory_space<vmem>>, %arg6: memref<1x128x128xf32, #tpu.memory_space<vmem>>) attributes {dimension_semantics = [#tpu.dimension_semantics<parallel>, #tpu.dimension_semantics<parallel>, #tpu.dimension_semantics<parallel>], iteration_bounds = array<i64: 2, 12, 1>, scalar_prefetch = 0 : i64, scratch_operands = 0 : i64, tpu.core_type = #tpu.core_type<tc>, window_params = [{transform_indices = @transform_0, window_bounds = array<i64: 1, 128, 512>}, {transform_indices = @transform_1, window_bounds = array<i64: 1, 512, 128>}, {transform_indices = @transform_2, window_bounds = array<i64: 1, 1, 128>}, {transform_indices = @transform_3, window_bounds = array<i64: 1, 128, 128>}]} {
    %c0 = arith.constant 0 : index
    %c0_0 = arith.constant 0 : index
    %c0_1 = arith.constant 0 : index
    %0 = vector.load %arg3[%c0, %c0_0, %c0_1] : memref<1x128x512xbf16, #tpu.memory_space<vmem>>, vector<1x128x512xbf16>
    %1 = vector.shape_cast %0 : vector<1x128x512xbf16> to vector<128x512xbf16>
    %c0_2 = arith.constant 0 : index
    %c0_3 = arith.constant 0 : index
    %c0_4 = arith.constant 0 : index
    %2 = vector.load %arg4[%c0_2, %c0_3, %c0_4] : memref<1x512x128xbf16, #tpu.memory_space<vmem>>, vector<1x512x128xbf16>
    %3 = vector.shape_cast %2 : vector<1x512x128xbf16> to vector<512x128xbf16>
    %cst = arith.constant dense<0.000000e+00> : vector<128x128xf32>
    %4 = tpu.matmul %1, %3, %cst {dimension_numbers = #tpu.dot_dimension_numbers<[1], [0], [0], [1], [0, 0, 1, 1], [], []>} : vector<128x512xbf16>, vector<512x128xbf16>, vector<128x128xf32> -> vector<128x128xf32>
    %c0_5 = arith.constant 0 : index
    %c0_6 = arith.constant 0 : index
    %c0_7 = arith.constant 0 : index
    %5 = vector.load %arg5[%c0_5, %c0_6, %c0_7] : memref<1x1x128xf32, #tpu.memory_space<vmem>>, vector<1x1x128xf32>
    %6 = vector.shape_cast %5 : vector<1x1x128xf32> to vector<1x128xf32>
    %7 = vector.broadcast %6 : vector<1x128xf32> to vector<128x128xf32>
    %8 = arith.addf %4, %7 : vector<128x128xf32>
    %c0_8 = arith.constant 0 : index
    %c0_9 = arith.constant 0 : index
    %c0_10 = arith.constant 0 : index
    %9 = vector.load %arg6[%c0_8, %c0_9, %c0_10] : memref<1x128x128xf32, #tpu.memory_space<vmem>>, vector<1x128x128xf32>
    %10 = vector.shape_cast %9 : vector<1x128x128xf32> to vector<128x128xf32>
    %11 = vector.shape_cast %8 : vector<128x128xf32> to vector<1x128x128xf32>
    tpu.vector_store %arg6[%c0_8, %c0_9, %c0_10], %11 {strides = array<i32>} : memref<1x128x128xf32, #tpu.memory_space<vmem>>, vector<1x128x128xf32>,
    return
  }
  func.func @transform_0(%arg0: i32, %arg1: i32, %arg2: i32) -> (i32, i32, i32) {
    %c0_i32 = arith.constant 0 : i32
    %c0_i32_0 = arith.constant 0 : i32
    return %arg0, %arg1, %c0_i32 : i32, i32, i32
  }
  func.func @transform_1(%arg0: i32, %arg1: i32, %arg2: i32) -> (i32, i32, i32) {
    %c0_i32 = arith.constant 0 : i32
    %c0_i32_0 = arith.constant 0 : i32
    return %arg0, %c0_i32, %arg2 : i32, i32, i32
  }
  func.func @transform_2(%arg0: i32, %arg1: i32, %arg2: i32) -> (i32, i32, i32) {
    %c0_i32 = arith.constant 0 : i32
    %c0_i32_0 = arith.constant 0 : i32
    return %arg0, %c0_i32, %arg2 : i32, i32, i32
  }
  func.func @transform_3(%arg0: i32, %arg1: i32, %arg2: i32) -> (i32, i32, i32) {
    %c0_i32 = arith.constant 0 : i32
    return %arg0, %arg1, %arg2 : i32, i32, i32
  }
}

module attributes {stable_mosaic.version = 11 : i64} {
  func.func @_dual_linear_kernel(%arg0: i32, %arg1: i32, %arg2: i32, %arg3: memref<1x128x128xbf16, #tpu.memory_space<vmem>>, %arg4: memref<1x128x128xbf16, #tpu.memory_space<vmem>>, %arg5: memref<1x1x128xf32, #tpu.memory_space<vmem>>, %arg6: memref<1x128x128xf32, #tpu.memory_space<vmem>>) attributes {dimension_semantics = [#tpu.dimension_semantics<parallel>, #tpu.dimension_semantics<parallel>, #tpu.dimension_semantics<parallel>], iteration_bounds = array<i64: 2, 12, 1>, scalar_prefetch = 0 : i64, scratch_operands = 0 : i64, tpu.core_type = #tpu.core_type<tc>, window_params = [{transform_indices = @transform_0, window_bounds = array<i64: 1, 128, 128>}, {transform_indices = @transform_1, window_bounds = array<i64: 1, 128, 128>}, {transform_indices = @transform_2, window_bounds = array<i64: 1, 1, 128>}, {transform_indices = @transform_3, window_bounds = array<i64: 1, 128, 128>}]} {
    %c0 = arith.constant 0 : index
    %c0_0 = arith.constant 0 : index
    %c0_1 = arith.constant 0 : index
    %0 = vector.load %arg3[%c0, %c0_0, %c0_1] : memref<1x128x128xbf16, #tpu.memory_space<vmem>>, vector<1x128x128xbf16>
    %1 = vector.shape_cast %0 : vector<1x128x128xbf16> to vector<128x128xbf16>
    %c0_2 = arith.constant 0 : index
    %c0_3 = arith.constant 0 : index
    %c0_4 = arith.constant 0 : index
    %2 = vector.load %arg4[%c0_2, %c0_3, %c0_4] : memref<1x128x128xbf16, #tpu.memory_space<vmem>>, vector<1x128x128xbf16>
    %3 = vector.shape_cast %2 : vector<1x128x128xbf16> to vector<128x128xbf16>
    %cst = arith.constant dense<0.000000e+00> : vector<128x128xf32>
    %4 = tpu.matmul %1, %3, %cst {dimension_numbers = #tpu.dot_dimension_numbers<[1], [0], [0], [1], [0, 0, 1, 1], [], []>} : vector<128x128xbf16>, vector<128x128xbf16>, vector<128x128xf32> -> vector<128x128xf32>
    %c0_5 = arith.constant 0 : index
    %c0_6 = arith.constant 0 : index
    %c0_7 = arith.constant 0 : index
    %5 = vector.load %arg5[%c0_5, %c0_6, %c0_7] : memref<1x1x128xf32, #tpu.memory_space<vmem>>, vector<1x1x128xf32>
    %6 = vector.shape_cast %5 : vector<1x1x128xf32> to vector<1x128xf32>
    %7 = vector.broadcast %6 : vector<1x128xf32> to vector<128x128xf32>
    %8 = arith.addf %4, %7 : vector<128x128xf32>
    %c0_8 = arith.constant 0 : index
    %c0_9 = arith.constant 0 : index
    %c0_10 = arith.constant 0 : index
    %9 = vector.load %arg6[%c0_8, %c0_9, %c0_10] : memref<1x128x128xf32, #tpu.memory_space<vmem>>, vector<1x128x128xf32>
    %10 = vector.shape_cast %9 : vector<1x128x128xf32> to vector<128x128xf32>
    %11 = vector.shape_cast %8 : vector<128x128xf32> to vector<1x128x128xf32>
    tpu.vector_store %arg6[%c0_8, %c0_9, %c0_10], %11 {strides = array<i32>} : memref<1x128x128xf32, #tpu.memory_space<vmem>>, vector<1x128x128xf32>,
    return
  }
  func.func @transform_0(%arg0: i32, %arg1: i32, %arg2: i32) -> (i32, i32, i32) {
    %c0_i32 = arith.constant 0 : i32
    %c0_i32_0 = arith.constant 0 : i32
    return %arg0, %arg1, %c0_i32 : i32, i32, i32
  }
  func.func @transform_1(%arg0: i32, %arg1: i32, %arg2: i32) -> (i32, i32, i32) {
    %c0_i32 = arith.constant 0 : i32
    %c0_i32_0 = arith.constant 0 : i32
    return %arg0, %c0_i32, %arg2 : i32, i32, i32
  }
  func.func @transform_2(%arg0: i32, %arg1: i32, %arg2: i32) -> (i32, i32, i32) {
    %c0_i32 = arith.constant 0 : i32
    %c0_i32_0 = arith.constant 0 : i32
    return %arg0, %c0_i32, %arg2 : i32, i32, i32
  }
  func.func @transform_3(%arg0: i32, %arg1: i32, %arg2: i32) -> (i32, i32, i32) {
    %c0_i32 = arith.constant 0 : i32
    return %arg0, %arg1, %arg2 : i32, i32, i32
  }
}

module attributes {stable_mosaic.version = 11 : i64} {
  func.func @_endfusion_kernel(%arg0: i32, %arg1: memref<128x8xf32, #tpu.memory_space<vmem>>, %arg2: memref<128x8xf32, #tpu.memory_space<vmem>>, %arg3: memref<128x2176xbf16, #tpu.memory_space<vmem>>, %arg4: memref<128x2176xbf16, #tpu.memory_space<vmem>>, %arg5: memref<8x128xbf16, #tpu.memory_space<vmem>>, %arg6: memref<2176x128xbf16, #tpu.memory_space<vmem>>, %arg7: memref<1x128xf32, #tpu.memory_space<vmem>>, %arg8: memref<128x128xf32, #tpu.memory_space<vmem>>) attributes {dimension_semantics = [#tpu.dimension_semantics<parallel>], iteration_bounds = array<i64: 12>, scalar_prefetch = 0 : i64, scratch_operands = 0 : i64, tpu.core_type = #tpu.core_type<tc>, window_params = [{transform_indices = @transform_0, window_bounds = array<i64: 128, 8>}, {transform_indices = @transform_1, window_bounds = array<i64: 128, 8>}, {transform_indices = @transform_2, window_bounds = array<i64: 128, 2176>}, {transform_indices = @transform_3, window_bounds = array<i64: 128, 2176>}, {pipeline_mode = #tpu.pipeline_mode<synchronous>, transform_indices = @transform_4, window_bounds = array<i64: 8, 128>}, {pipeline_mode = #tpu.pipeline_mode<synchronous>, transform_indices = @transform_5, window_bounds = array<i64: 2176, 128>}, {pipeline_mode = #tpu.pipeline_mode<synchronous>, transform_indices = @transform_6, window_bounds = array<i64: 1, 128>}, {transform_indices = @transform_7, window_bounds = array<i64: 128, 128>}]} {
    %c0 = arith.constant 0 : index
    %c0_0 = arith.constant 0 : index
    %0 = vector.load %arg1[%c0, %c0_0] : memref<128x8xf32, #tpu.memory_space<vmem>>, vector<128x8xf32>
    %c0_1 = arith.constant 0 : index
    %c0_2 = arith.constant 0 : index
    %1 = vector.load %arg2[%c0_1, %c0_2] : memref<128x8xf32, #tpu.memory_space<vmem>>, vector<128x8xf32>
    %2 = vector.extract_strided_slice %0 {offsets = [0, 2], sizes = [128, 1], strides = [1, 1]} : vector<128x8xf32> to vector<128x1xf32>
    %3 = math.absf %2 : vector<128x1xf32>
    %4 = vector.extract_strided_slice %1 {offsets = [0, 2], sizes = [128, 1], strides = [1, 1]} : vector<128x8xf32> to vector<128x1xf32>
    %5 = math.absf %4 : vector<128x1xf32>
    %6 = arith.cmpf ole, %3, %5 : vector<128x1xf32>
    %7 = vector.shape_cast %6 : vector<128x1xi1> to vector<128x1xi1>
    %8 = vector.broadcast %7 : vector<128x1xi1> to vector<128x8xi1>
    %9 = arith.select %8, %0, %1 : vector<128x8xi1>, vector<128x8xf32>
    %10 = arith.truncf %9 : vector<128x8xf32> to vector<128x8xbf16>
    %c0_3 = arith.constant 0 : index
    %c0_4 = arith.constant 0 : index
    %11 = vector.load %arg3[%c0_3, %c0_4] : memref<128x2176xbf16, #tpu.memory_space<vmem>>, vector<128x2176xbf16>
    %c0_5 = arith.constant 0 : index
    %c0_6 = arith.constant 0 : index
    %12 = vector.load %arg4[%c0_5, %c0_6] : memref<128x2176xbf16, #tpu.memory_space<vmem>>, vector<128x2176xbf16>
    %13 = vector.shape_cast %6 : vector<128x1xi1> to vector<128x1xi1>
    %14 = vector.broadcast %13 : vector<128x1xi1> to vector<128x2176xi1>
    %15 = arith.select %14, %11, %12 : vector<128x2176xi1>, vector<128x2176xbf16>
    %c0_7 = arith.constant 0 : index
    %c0_8 = arith.constant 0 : index
    %16 = vector.load %arg5[%c0_7, %c0_8] : memref<8x128xbf16, #tpu.memory_space<vmem>>, vector<8x128xbf16>
    %cst = arith.constant dense<0.000000e+00> : vector<128x128xf32>
    %17 = tpu.matmul %10, %16, %cst {dimension_numbers = #tpu.dot_dimension_numbers<[1], [0], [0], [1], [0, 0, 1, 1], [], []>} : vector<128x8xbf16>, vector<8x128xbf16>, vector<128x128xf32> -> vector<128x128xf32>
    %c0_9 = arith.constant 0 : index
    %c0_10 = arith.constant 0 : index
    %18 = vector.load %arg6[%c0_9, %c0_10] : memref<2176x128xbf16, #tpu.memory_space<vmem>>, vector<2176x128xbf16>
    %cst_11 = arith.constant dense<0.000000e+00> : vector<128x128xf32>
    %19 = tpu.matmul %15, %18, %cst_11 {dimension_numbers = #tpu.dot_dimension_numbers<[1], [0], [0], [1], [0, 0, 1, 1], [], []>} : vector<128x2176xbf16>, vector<2176x128xbf16>, vector<128x128xf32> -> vector<128x128xf32>
    %20 = arith.addf %17, %19 : vector<128x128xf32>
    %c0_12 = arith.constant 0 : index
    %c0_13 = arith.constant 0 : index
    %21 = vector.load %arg7[%c0_12, %c0_13] : memref<1x128xf32, #tpu.memory_space<vmem>>, vector<1x128xf32>
    %22 = vector.broadcast %21 : vector<1x128xf32> to vector<128x128xf32>
    %23 = arith.addf %20, %22 : vector<128x128xf32>
    %c0_14 = arith.constant 0 : index
    %c0_15 = arith.constant 0 : index
    %24 = vector.load %arg8[%c0_14, %c0_15] : memref<128x128xf32, #tpu.memory_space<vmem>>, vector<128x128xf32>
    tpu.vector_store %arg8[%c0_14, %c0_15], %23 {strides = array<i32>} : memref<128x128xf32, #tpu.memory_space<vmem>>, vector<128x128xf32>,
    return
  }
  func.func @transform_0(%arg0: i32) -> (i32, i32) {
    %c0_i32 = arith.constant 0 : i32
    %c0_i32_0 = arith.constant 0 : i32
    return %arg0, %c0_i32 : i32, i32
  }
  func.func @transform_1(%arg0: i32) -> (i32, i32) {
    %c0_i32 = arith.constant 0 : i32
    %c0_i32_0 = arith.constant 0 : i32
    return %arg0, %c0_i32 : i32, i32
  }
  func.func @transform_2(%arg0: i32) -> (i32, i32) {
    %c0_i32 = arith.constant 0 : i32
    %c0_i32_0 = arith.constant 0 : i32
    return %arg0, %c0_i32 : i32, i32
  }
  func.func @transform_3(%arg0: i32) -> (i32, i32) {
    %c0_i32 = arith.constant 0 : i32
    %c0_i32_0 = arith.constant 0 : i32
    return %arg0, %c0_i32 : i32, i32
  }
  func.func @transform_4(%arg0: i32) -> (i32, i32) {
    %c0_i32 = arith.constant 0 : i32
    %c0_i32_0 = arith.constant 0 : i32
    %c0_i32_1 = arith.constant 0 : i32
    return %c0_i32, %c0_i32_0 : i32, i32
  }
  func.func @transform_5(%arg0: i32) -> (i32, i32) {
    %c0_i32 = arith.constant 0 : i32
    %c0_i32_0 = arith.constant 0 : i32
    %c0_i32_1 = arith.constant 0 : i32
    return %c0_i32, %c0_i32_0 : i32, i32
  }
  func.func @transform_6(%arg0: i32) -> (i32, i32) {
    %c0_i32 = arith.constant 0 : i32
    %c0_i32_0 = arith.constant 0 : i32
    %c0_i32_1 = arith.constant 0 : i32
    return %c0_i32, %c0_i32_0 : i32, i32
  }
  func.func @transform_7(%arg0: i32) -> (i32, i32) {
    %c0_i32 = arith.constant 0 : i32
    %c0_i32_0 = arith.constant 0 : i32
    return %arg0, %c0_i32 : i32, i32
  }
}

module attributes {stable_mosaic.version = 11 : i64} {
  func.func @_linear_kernel(%arg0: i32, %arg1: i32, %arg2: memref<8x768xbf16, #tpu.memory_space<vmem>>, %arg3: memref<768x512xbf16, #tpu.memory_space<vmem>>, %arg4: memref<1x512xf32, #tpu.memory_space<vmem>>, %arg5: memref<8x512xf32, #tpu.memory_space<vmem>>) attributes {dimension_semantics = [#tpu.dimension_semantics<parallel>, #tpu.dimension_semantics<parallel>], iteration_bounds = array<i64: 1, 26>, scalar_prefetch = 0 : i64, scratch_operands = 0 : i64, tpu.core_type = #tpu.core_type<tc>, window_params = [{transform_indices = @transform_0, window_bounds = array<i64: 8, 768>}, {transform_indices = @transform_1, window_bounds = array<i64: 768, 512>}, {transform_indices = @transform_2, window_bounds = array<i64: 1, 512>}, {transform_indices = @transform_3, window_bounds = array<i64: 8, 512>}]} {
    %c0 = arith.constant 0 : index
    %c0_0 = arith.constant 0 : index
    %0 = vector.load %arg2[%c0, %c0_0] : memref<8x768xbf16, #tpu.memory_space<vmem>>, vector<8x768xbf16>
    %c0_1 = arith.constant 0 : index
    %c0_2 = arith.constant 0 : index
    %1 = vector.load %arg3[%c0_1, %c0_2] : memref<768x512xbf16, #tpu.memory_space<vmem>>, vector<768x512xbf16>
    %cst = arith.constant dense<0.000000e+00> : vector<8x512xf32>
    %2 = tpu.matmul %0, %1, %cst {dimension_numbers = #tpu.dot_dimension_numbers<[1], [0], [0], [1], [0, 0, 1, 1], [], []>} : vector<8x768xbf16>, vector<768x512xbf16>, vector<8x512xf32> -> vector<8x512xf32>
    %c0_3 = arith.constant 0 : index
    %c0_4 = arith.constant 0 : index
    %3 = vector.load %arg4[%c0_3, %c0_4] : memref<1x512xf32, #tpu.memory_space<vmem>>, vector<1x512xf32>
    %4 = vector.broadcast %3 : vector<1x512xf32> to vector<8x512xf32>
    %5 = arith.addf %2, %4 : vector<8x512xf32>
    %c0_5 = arith.constant 0 : index
    %c0_6 = arith.constant 0 : index
    %6 = vector.load %arg5[%c0_5, %c0_6] : memref<8x512xf32, #tpu.memory_space<vmem>>, vector<8x512xf32>
    tpu.vector_store %arg5[%c0_5, %c0_6], %5 {strides = array<i32>} : memref<8x512xf32, #tpu.memory_space<vmem>>, vector<8x512xf32>,
    return
  }
  func.func @transform_0(%arg0: i32, %arg1: i32) -> (i32, i32) {
    %c0_i32 = arith.constant 0 : i32
    %c0_i32_0 = arith.constant 0 : i32
    return %arg0, %c0_i32 : i32, i32
  }
  func.func @transform_1(%arg0: i32, %arg1: i32) -> (i32, i32) {
    %c0_i32 = arith.constant 0 : i32
    %c0_i32_0 = arith.constant 0 : i32
    return %c0_i32, %arg1 : i32, i32
  }
  func.func @transform_2(%arg0: i32, %arg1: i32) -> (i32, i32) {
    %c0_i32 = arith.constant 0 : i32
    %c0_i32_0 = arith.constant 0 : i32
    return %c0_i32, %arg1 : i32, i32
  }
  func.func @transform_3(%arg0: i32, %arg1: i32) -> (i32, i32) {
    %c0_i32 = arith.constant 0 : i32
    return %arg0, %arg1 : i32, i32
  }
}

</mosaic_0001>

<llo_original>
// kernel: squeeze.9
$region0: #{squeeze.9}
  %s0 = inlined_call_operand.vmem [shape: f32[1,1452,3], index: 0, kind: input, shape index: {}]
  %s1 = inlined_call_operand.vmem [shape: f32[2,726,3], index: 1, kind: output, shape index: {}]
  $region1: #{squeeze.9} parent=0
    #allocation0 [shape = 'u8[73728]{0}', space=vmem, size = 0x12000, scoped, tag = 'scoped mem for output reshape']
    #allocation1 [shape = 'u8[49152]{0}', space=vmem, size = 0xc000, scoped, tag = 'scoped mem for input reshape']
    %s3 = sshll.u32 1, 4
    %s4 = ssub.s32 %s3, 1
    %s5 = smul.addr 4, 11
    %s6 = scalar_lea.vmem %s0, %s5
    %v7 = vld [vmem:[%s6] sm:%s4]
    %s8 = scalar_lea.vmem [#allocation1], 88
    %9 = vst [vmem:[%s8] sm:%s4] %v7
    %s10 = smul.addr 4, 10
    %s11 = scalar_lea.vmem %s0, %s10
    %v12 = vld [vmem:[%s11] sm:%s4]
    %s13 = scalar_lea.vmem [#allocation1], 80
    %14 = vst [vmem:[%s13] sm:%s4] %v12
    %s15 = smul.addr 4, 9
    %s16 = scalar_lea.vmem %s0, %s15
    %v17 = vld [vmem:[%s16] sm:%s4]
    %s18 = scalar_lea.vmem [#allocation1], 72
    %19 = vst [vmem:[%s18] sm:%s4] %v17
    %s20 = smul.addr 4, 8
    %s21 = scalar_lea.vmem %s0, %s20
    %v22 = vld [vmem:[%s21] sm:%s4]
    %s23 = scalar_lea.vmem [#allocation1], 64
    %24 = vst [vmem:[%s23] sm:%s4] %v22
    %s25 = smul.addr 4, 7
    %s26 = scalar_lea.vmem %s0, %s25
    %v27 = vld [vmem:[%s26] sm:%s4]
    %s28 = scalar_lea.vmem [#allocation1], 56
    %29 = vst [vmem:[%s28] sm:%s4] %v27
    %s30 = smul.addr 4, 6
    %s31 = scalar_lea.vmem %s0, %s30
    %v32 = vld [vmem:[%s31] sm:%s4]
    %s33 = scalar_lea.vmem [#allocation1], 48
    %34 = vst [vmem:[%s33] sm:%s4] %v32
    %s35 = smul.addr 4, 5
    %s36 = scalar_lea.vmem %s0, %s35
    %v37 = vld [vmem:[%s36] sm:%s4]
    %s38 = scalar_lea.vmem [#allocation1], 40
    %39 = vst [vmem:[%s38] sm:%s4] %v37
    %s40 = smul.addr 4, 4
    %s41 = scalar_lea.vmem %s0, %s40
    %v42 = vld [vmem:[%s41] sm:%s4]
    %s43 = scalar_lea.vmem [#allocation1], 32
    %44 = vst [vmem:[%s43] sm:%s4] %v42
    %s45 = smul.addr 4, 3
    %s46 = scalar_lea.vmem %s0, %s45
    %v47 = vld [vmem:[%s46] sm:%s4]
    %s48 = scalar_lea.vmem [#allocation1], 24
    %49 = vst [vmem:[%s48] sm:%s4] %v47
    %s50 = smul.addr 4, 2
    %s51 = scalar_lea.vmem %s0, %s50
    %v52 = vld [vmem:[%s51] sm:%s4]
    %s53 = scalar_lea.vmem [#allocation1], 16
    %54 = vst [vmem:[%s53] sm:%s4] %v52
    %s55 = scalar_lea.vmem %s0, 4
    %v56 = vld [vmem:[%s55] sm:%s4]
    %s57 = scalar_lea.vmem [#allocation1], 8
    %58 = vst [vmem:[%s57] sm:%s4] %v56
    %v59 = vld [vmem:[%s0] sm:%s4]
    %60 = vst [vmem:[#allocation1] sm:%s4] %v59
    %s61 = scalar_lea.vmem [#allocation1], 40
    %v62 = vld [vmem:[%s61] sm:$0x7]
    %vm63 = vcmask 703488
    %s64 = scalar_lea.vmem [#allocation0], 40
    %65 = vst.msk [vmem:[%s64] ss:$48 sm:$0x3] %vm63, %v62
    %s66 = scalar_lea.vmem [#allocation0], 134
    %67 = vst.msk [vmem:[%s66] sm:$0x4] %vm63, %v62
    %v68 = vld [vmem:[#allocation1] sm:$0x7]
    %69 = vst [vmem:[#allocation0] ss:$48 sm:$0x3] %v68
    %s70 = scalar_lea.vmem [#allocation0], 94
    %71 = vst [vmem:[%s70] sm:$0x4] %v68
    %s72 = scalar_lea.vmem [#allocation1], 8
    %v73 = vld [vmem:[%s72] sm:$0x7]
    %s74 = scalar_lea.vmem [#allocation0], 8
    %75 = vst [vmem:[%s74] ss:$48 sm:$0x3] %v73
    %s76 = scalar_lea.vmem [#allocation0], 102
    %77 = vst [vmem:[%s76] sm:$0x4] %v73
    %s78 = scalar_lea.vmem [#allocation1], 16
    %v79 = vld [vmem:[%s78] sm:$0x7]
    %s80 = scalar_lea.vmem [#allocation0], 16
    %81 = vst [vmem:[%s80] ss:$48 sm:$0x3] %v79
    %s82 = scalar_lea.vmem [#allocation0], 110
    %83 = vst [vmem:[%s82] sm:$0x4] %v79
    %s84 = scalar_lea.vmem [#allocation1], 24
    %v85 = vld [vmem:[%s84] sm:$0x7]
    %s86 = scalar_lea.vmem [#allocation0], 24
    %87 = vst [vmem:[%s86] ss:$48 sm:$0x3] %v85
    %s88 = scalar_lea.vmem [#allocation0], 118
    %89 = vst [vmem:[%s88] sm:$0x4] %v85
    %s90 = scalar_lea.vmem [#allocation1], 32
    %v91 = vld [vmem:[%s90] sm:$0x7]
    %s92 = scalar_lea.vmem [#allocation0], 32
    %93 = vst [vmem:[%s92] ss:$48 sm:$0x3] %v91
    %s94 = scalar_lea.vmem [#allocation0], 126
    %95 = vst [vmem:[%s94] sm:$0x4] %v91
    %s96 = scalar_lea.vmem [#allocation1], 40
    %v97 = vld.sshfl [vmem:[%s96] sm:$0xff pattern:$0xaaa29180]
    %s98 = scalar_lea.vmem [#allocation1], 8
    %s99 = smov 192
    %v100 = vld [vmem:[%s98] ss:$8 sm:%s99]
    %vm101 = vcmask 1047558
    %v102 = vsel %vm101, %v100, %v97
    %s103 = scalar_lea.vmem [#allocation1], 88
    %v104 = vld [vmem:[%s103] sm:$0x7]
    %vm105 = vcmask 703488
    %v106 = vsel %vm105, %v104, %v102
    %107 = vrot.lane.b32.xlu0 %v106, 42
    %v108 = vpop.permute.xlu0 %107
    %vm109 = vcmask 343040
    %s110 = scalar_lea.vmem [#allocation0], 1
    %111 = vst.msk [vmem:[%s110] ss:$8 sm:$0x3] %vm109, %v108
    %s112 = scalar_lea.vmem [#allocation0], 33
    %113 = vst.msk [vmem:[%s112] ss:$8 sm:$0xc] %vm109, %v108
    %s114 = scalar_lea.vmem [#allocation0], 65
    %115 = vst.msk [vmem:[%s114] ss:$8 sm:$0x30] %vm109, %v108
    %s116 = scalar_lea.vmem [#allocation0], 4294967265
    %117 = vst.msk [vmem:[%s116] ss:$8 sm:$0xc0] %vm109, %v108
    %vm118 = vcmask 703824
    %s119 = scalar_lea.vmem [#allocation0], 41
    %120 = vst.msk [vmem:[%s119] ss:$48 sm:$0x3] %vm118, %v108
    %s121 = scalar_lea.vmem [#allocation0], 135
    %122 = vst.msk [vmem:[%s121] sm:$0x4] %vm118, %v108
    %s123 = scalar_lea.vmem [#allocation1], 57
    %v124 = vld.sshfl [vmem:[%s123] sm:$0xff pattern:$0xffff9180]
    %s125 = scalar_lea.vmem [#allocation1], 73
    %v126 = vld.sshfl [vmem:[%s125] sm:$0xff pattern:$0x80777777]
    %vm127 = vcmask 1047557
    %v128 = vsel %vm127, %v126, %v124
    %s129 = scalar_lea.vmem [#allocation1], 48
    %v130 = vld.sshfl [vmem:[%s129] sm:$0xff pattern:$0xaaa29180]
    %s131 = scalar_lea.vmem [#allocation1], 16
    %s132 = smov 192
    %v133 = vld [vmem:[%s131] ss:$8 sm:%s132]
    %vm134 = vcmask 1047558
    %v135 = vsel %vm134, %v133, %v130
    %vm136 = vcmask 703488
    %v137 = vsel %vm136, %v135, %v128
    %138 = vrot.lane.b32.xlu0 %v137, 42
    %v139 = vpop.permute.xlu0 %138
    %vm140 = vcmask 343040
    %s141 = scalar_lea.vmem [#allocation0], 65
    %142 = vst.msk [vmem:[%s141] ss:$8 sm:$0x3] %vm140, %v139
    %s143 = scalar_lea.vmem [#allocation0], 97
    %144 = vst.msk [vmem:[%s143] ss:$8 sm:$0xc] %vm140, %v139
    %s145 = scalar_lea.vmem [#allocation0], 1
    %146 = vst.msk [vmem:[%s145] ss:$8 sm:$0x30] %vm140, %v139
    %s147 = scalar_lea.vmem [#allocation0], 33
    %148 = vst.msk [vmem:[%s147] ss:$8 sm:$0xc0] %vm140, %v139
    %vm149 = vcmask 1047888
    %s150 = scalar_lea.vmem [#allocation0], 1
    %151 = vst.msk [vmem:[%s150] ss:$8 sm:$0x3] %vm149, %v139
    %s152 = scalar_lea.vmem [#allocation0], 33
    %153 = vst.msk [vmem:[%s152] ss:$8 sm:$0xc] %vm149, %v139
    %s154 = scalar_lea.vmem [#allocation0], 65
    %155 = vst.msk [vmem:[%s154] ss:$8 sm:$0x30] %vm149, %v139
    %s156 = scalar_lea.vmem [#allocation0], 4294967265
    %157 = vst.msk [vmem:[%s156] ss:$8 sm:$0xc0] %vm149, %v139
    %s158 = scalar_lea.vmem [#allocation1], 74
    %s159 = smov 3
    %v160 = vld [vmem:[%s158] ss:$8 sm:%s159]
    %s161 = scalar_lea.vmem [#allocation1], 65
    %v162 = vld.sshfl [vmem:[%s161] sm:$0xff pattern:$0xffff9180]
    %s163 = scalar_lea.vmem [#allocation1], 76
    %v164 = vld [vmem:[%s163] sm:$0x60]
    %vm165 = vcmask 1046533
    %v166 = vsel %vm165, %v164, %v162
    %vm167 = vcmask 703488
    %v168 = vsel %vm167, %v166, %v160
    %169 = vrot.lane.b32.xlu0 %v168, 42
    %v170 = vpop.permute.xlu0 %169
    %vm171 = vcmask 343040
    %s172 = scalar_lea.vmem [#allocation0], 129
    %173 = vst.msk [vmem:[%s172] ss:$8 sm:$0x3] %vm171, %v170
    %vm174 = vcmask 1047888
    %s175 = scalar_lea.vmem [#allocation0], 65
    %176 = vst.msk [vmem:[%s175] ss:$8 sm:$0x3] %vm174, %v170
    %s177 = scalar_lea.vmem [#allocation0], 97
    %178 = vst.msk [vmem:[%s177] ss:$8 sm:$0xc] %vm174, %v170
    %s179 = scalar_lea.vmem [#allocation0], 4294967137
    %180 = vst.msk [vmem:[%s179] ss:$48 sm:$0x30] %vm174, %v170
    %s181 = scalar_lea.vmem [#allocation0], 123
    %182 = vst.msk [vmem:[%s181] sm:$0x40] %vm174, %v170
    %s184 = sshll.u32 1, 2
    %s185 = ssub.s32 %s184, 1
    %v187 = vld [vmem:[#allocation0] sm:%s185]
    %s188 = sshll.u32 1, 2
    %s189 = ssub.s32 %s188, 1
    %190 = vst [vmem:[%s1] sm:%s189] %v187
    %s191 = scalar_lea.vmem [#allocation0], 8
    %v192 = vld [vmem:[%s191] sm:%s185]
    %s193 = sshll.u32 1, 2
    %s194 = ssub.s32 %s193, 1
    %s195 = scalar_lea.vmem %s1, 2
    %196 = vst [vmem:[%s195] sm:%s194] %v192
    %s197 = scalar_lea.vmem [#allocation0], 16
    %v198 = vld [vmem:[%s197] sm:%s185]
    %s199 = sshll.u32 1, 2
    %s200 = ssub.s32 %s199, 1
    %s201 = smul.addr 2, 2
    %s202 = scalar_lea.vmem %s1, %s201
    %203 = vst [vmem:[%s202] sm:%s200] %v198
    %s204 = scalar_lea.vmem [#allocation0], 24
    %v205 = vld [vmem:[%s204] sm:%s185]
    %s206 = sshll.u32 1, 2
    %s207 = ssub.s32 %s206, 1
    %s208 = smul.addr 2, 3
    %s209 = scalar_lea.vmem %s1, %s208
    %210 = vst [vmem:[%s209] sm:%s207] %v205
    %s211 = scalar_lea.vmem [#allocation0], 32
    %v212 = vld [vmem:[%s211] sm:%s185]
    %s213 = sshll.u32 1, 2
    %s214 = ssub.s32 %s213, 1
    %s215 = smul.addr 2, 4
    %s216 = scalar_lea.vmem %s1, %s215
    %217 = vst [vmem:[%s216] sm:%s214] %v212
    %s218 = scalar_lea.vmem [#allocation0], 40
    %v219 = vld [vmem:[%s218] sm:%s185]
    %s220 = sshll.u32 1, 2
    %s221 = ssub.s32 %s220, 1
    %s222 = smul.addr 2, 5
    %s223 = scalar_lea.vmem %s1, %s222
    %224 = vst [vmem:[%s223] sm:%s221] %v219
    %s225 = scalar_lea.vmem [#allocation0], 48
    %v226 = vld [vmem:[%s225] sm:%s185]
    %s227 = sshll.u32 1, 2
    %s228 = ssub.s32 %s227, 1
    %s229 = smul.addr 2, 6
    %s230 = scalar_lea.vmem %s1, %s229
    %231 = vst [vmem:[%s230] sm:%s228] %v226
    %s232 = scalar_lea.vmem [#allocation0], 56
    %v233 = vld [vmem:[%s232] sm:%s185]
    %s234 = sshll.u32 1, 2
    %s235 = ssub.s32 %s234, 1
    %s236 = smul.addr 2, 7
    %s237 = scalar_lea.vmem %s1, %s236
    %238 = vst [vmem:[%s237] sm:%s235] %v233
    %s239 = scalar_lea.vmem [#allocation0], 64
    %v240 = vld [vmem:[%s239] sm:%s185]
    %s241 = sshll.u32 1, 2
    %s242 = ssub.s32 %s241, 1
    %s243 = smul.addr 2, 8
    %s244 = scalar_lea.vmem %s1, %s243
    %245 = vst [vmem:[%s244] sm:%s242] %v240
    %s246 = scalar_lea.vmem [#allocation0], 72
    %v247 = vld [vmem:[%s246] sm:%s185]
    %s248 = sshll.u32 1, 2
    %s249 = ssub.s32 %s248, 1
    %s250 = smul.addr 2, 9
    %s251 = scalar_lea.vmem %s1, %s250
    %252 = vst [vmem:[%s251] sm:%s249] %v247
    %s253 = scalar_lea.vmem [#allocation0], 80
    %v254 = vld [vmem:[%s253] sm:%s185]
    %s255 = sshll.u32 1, 2
    %s256 = ssub.s32 %s255, 1
    %s257 = smul.addr 2, 10
    %s258 = scalar_lea.vmem %s1, %s257
    %259 = vst [vmem:[%s258] sm:%s256] %v254
    %s260 = scalar_lea.vmem [#allocation0], 88
    %v261 = vld [vmem:[%s260] sm:%s185]
    %s262 = sshll.u32 1, 2
    %s263 = ssub.s32 %s262, 1
    %s264 = smul.addr 2, 11
    %s265 = scalar_lea.vmem %s1, %s264
    %266 = vst [vmem:[%s265] sm:%s263] %v261
    %s267 = scalar_lea.vmem [#allocation0], 96
    %v268 = vld [vmem:[%s267] sm:%s185]
    %s269 = sshll.u32 1, 2
    %s270 = ssub.s32 %s269, 1
    %s271 = smul.addr 2, 12
    %s272 = scalar_lea.vmem %s1, %s271
    %273 = vst [vmem:[%s272] sm:%s270] %v268
    %s274 = scalar_lea.vmem [#allocation0], 104
    %v275 = vld [vmem:[%s274] sm:%s185]
    %s276 = sshll.u32 1, 2
    %s277 = ssub.s32 %s276, 1
    %s278 = smul.addr 2, 13
    %s279 = scalar_lea.vmem %s1, %s278
    %280 = vst [vmem:[%s279] sm:%s277] %v275
    %s281 = scalar_lea.vmem [#allocation0], 112
    %v282 = vld [vmem:[%s281] sm:%s185]
    %s283 = sshll.u32 1, 2
    %s284 = ssub.s32 %s283, 1
    %s285 = smul.addr 2, 14
    %s286 = scalar_lea.vmem %s1, %s285
    %287 = vst [vmem:[%s286] sm:%s284] %v282
    %s288 = scalar_lea.vmem [#allocation0], 120
    %v289 = vld [vmem:[%s288] sm:%s185]
    %s290 = sshll.u32 1, 2
    %s291 = ssub.s32 %s290, 1
    %s292 = smul.addr 2, 15
    %s293 = scalar_lea.vmem %s1, %s292
    %294 = vst [vmem:[%s293] sm:%s291] %v289
    %s295 = scalar_lea.vmem [#allocation0], 128
    %v296 = vld [vmem:[%s295] sm:%s185]
    %s297 = sshll.u32 1, 2
    %s298 = ssub.s32 %s297, 1
    %s299 = smul.addr 2, 16
    %s300 = scalar_lea.vmem %s1, %s299
    %301 = vst [vmem:[%s300] sm:%s298] %v296
    %s302 = scalar_lea.vmem [#allocation0], 136
    %v303 = vld [vmem:[%s302] sm:%s185]
    %s304 = sshll.u32 1, 2
    %s305 = ssub.s32 %s304, 1
    %s306 = smul.addr 2, 17
    %s307 = scalar_lea.vmem %s1, %s306
    %308 = vst [vmem:[%s307] sm:%s305] %v303

</llo_original>
